<compile_context>
chip_gen: v7x
topology: tpu7x:2x2x1
jax: 0.10.0
libtpu: 0.0.40
codegen_flags: <defaults>
</compile_context>

<pallas_src>
import functools

import jax
import jax.numpy as jnp
import numpy as np
from jax.experimental import pallas as pl
from jax.experimental.pallas import tpu as pltpu


# ---------------------------------------------------------------------------
# Generation-aware VMEM capacity (queried once, outside jit).
# ---------------------------------------------------------------------------
try:
    _VMEM_CAP = int(pltpu.get_tpu_info().vmem_capacity_bytes)
except Exception:  # pragma: no cover - conservative fallback (v7x-sized)
    _VMEM_CAP = 64 * 1024 * 1024

# 40 MiB limit on v7x-class (64 MiB physical), 80 MiB on v5e/v6e (128 MiB).
_VMEM_LIMIT = 40 * 1024 * 1024 if _VMEM_CAP <= 64 * 1024 * 1024 else 80 * 1024 * 1024


# ---------------------------------------------------------------------------
# Kernel.  Tiles are (C, TL): channels on sublanes, spatial on lanes.
# ---------------------------------------------------------------------------

def _lafm_kernel(x_ref, y_ref, wx_ref, wy_ref, b_ref, out_ref, *, cf, residual):
    f32 = jnp.float32
    xb = x_ref[0]            # (Ct, TL)
    yb = y_ref[0]            # (Cc, TL)
    # Two fused matmuls + one bias add produce every linear quantity at once.
    z = (jnp.dot(wx_ref[...], xb, preferred_element_type=f32)
         + jnp.dot(wy_ref[...], yb, preferred_element_type=f32)
         + b_ref[...])       # (k*Cf, TL) float32
    xt = z[0 * cf:1 * cf]                      # conv_trans(x)
    yc = z[1 * cf:2 * cf]                      # conv_cnn(y)
    a = jax.nn.sigmoid(z[2 * cf:3 * cf])       # sigmoid(conv1(fuse[:Cf]))
    b = jax.nn.sigmoid(z[3 * cf:4 * cf])       # sigmoid(conv2(fuse[Cf:]))
    # softmax over the 2-element stack: w0 = exp(a)/(exp(a)+exp(b)) = sigmoid(a-b)
    w0 = jax.nn.sigmoid(a - b)
    out = w0 * xt + (1.0 - w0) * yc
    if residual:
        out = out + z[4 * cf:5 * cf]           # conv(cat(x, y))
    out_ref[0] = out.astype(out_ref.dtype)


# ---------------------------------------------------------------------------
# Host-side helpers.
# ---------------------------------------------------------------------------

def _round_up(v, m):
    return (v + m - 1) // m * m


def _choose_lane_tile(hwp, n_batch, bytes_per_lane, max_tl, budget_bytes):
    """Largest lane tile that (a) divides the 128-padded spatial extent,
    (b) fits the VMEM budget, (c) is <= max_tl, and (d) leaves >=2 grid steps
    when possible (v7x has two TensorCores)."""
    cap = max(128, min(max_tl, budget_bytes // max(bytes_per_lane, 1)))
    cap = (cap // 128) * 128
    tl = 128
    for cand in range(128, hwp + 1, 128):
        if cand <= cap and hwp % cand == 0:
            tl = cand
    if n_batch * (hwp // tl) < 2 and hwp >= 256:
        half = 128
        for cand in range(128, hwp // 2 + 1, 128):
            if hwp % cand == 0:
                half = cand
        tl = min(tl, half)
    return tl


def fold_lafm_params(params, residual=False, compute_dtype=jnp.bfloat16):
    """Fold conv_fuse -> conv1/conv2 (consecutive 1x1 convs => linear) and stack
    everything into 3 arrays for the kernel:
        wx:   (k*Cf, Ct)   x-side weight stack   [wt.T; 0; wa_x.T; wb_x.T; (wr_x.T)]
        wy:   (k*Cf, Cc)   y-side weight stack   [0; wc.T; wa_y.T; wb_y.T; (wr_y.T)]
        bias: (k*Cf, 1)    per-row bias stack    [bt; bc; ba; bb; (br)]
    Done in float64 numpy, once per weight set (hoisted out of jit)."""
    f64 = lambda a: np.asarray(a, dtype=np.float64)
    wt, bt = f64(params["wt"]), f64(params["bt"])
    wc, bc = f64(params["wc"]), f64(params["bc"])
    wf, bf = f64(params["wf"]), f64(params["bf"])
    w1, b1 = f64(params["w1"]), f64(params["b1"])
    w2, b2 = f64(params["w2"]), f64(params["b2"])

    ct, cf = wt.shape
    cc = wc.shape[0]
    wf00, wf01 = wf[:cf, :cf], wf[:cf, cf:]
    wf10, wf11 = wf[cf:, :cf], wf[cf:, cf:]
    bf0, bf1 = bf[:, :cf], bf[:, cf:]

    wa_x = wt @ wf00 @ w1
    wa_y = wc @ wf10 @ w1
    ba = bt @ wf00 @ w1 + bc @ wf10 @ w1 + bf0 @ w1 + b1
    wb_x = wt @ wf01 @ w2
    wb_y = wc @ wf11 @ w2
    bb = bt @ wf01 @ w2 + bc @ wf11 @ w2 + bf1 @ w2 + b2

    blocks_x = [wt.T, np.zeros((cf, ct)), wa_x.T, wb_x.T]
    blocks_y = [np.zeros((cf, cc)), wc.T, wa_y.T, wb_y.T]
    blocks_b = [bt.T, bc.T, ba.T, bb.T]
    if residual:
        wr, br = f64(params["wr"]), f64(params["br"])
        blocks_x.append(wr[:ct].T)
        blocks_y.append(wr[ct:].T)
        blocks_b.append(br.T)

    return {
        "wx": jnp.asarray(np.concatenate(blocks_x, axis=0), dtype=compute_dtype),
        "wy": jnp.asarray(np.concatenate(blocks_y, axis=0), dtype=compute_dtype),
        # bias is added AFTER the f32-accumulated matmuls -> keep it f32.
        "bias": jnp.asarray(np.concatenate(blocks_b, axis=0), dtype=jnp.float32),
        "cf": int(cf),
        "residual": bool(residual),
    }


def init_lafm_params(key, channels_trans, channels_cnn, channels_fuse, residual=False):
    """Deterministic synthetic parameters. Weight layout is (Cin, Cout)."""
    ks = jax.random.split(key, 12)
    scale = 0.1
    p = {
        "wt": scale * jax.random.normal(ks[0], (channels_trans, channels_fuse), jnp.float32),
        "bt": scale * jax.random.normal(ks[1], (1, channels_fuse), jnp.float32),
        "wc": scale * jax.random.normal(ks[2], (channels_cnn, channels_fuse), jnp.float32),
        "bc": scale * jax.random.normal(ks[3], (1, channels_fuse), jnp.float32),
        "wf": scale * jax.random.normal(ks[4], (2 * channels_fuse, 2 * channels_fuse), jnp.float32),
        "bf": scale * jax.random.normal(ks[5], (1, 2 * channels_fuse), jnp.float32),
        "w1": scale * jax.random.normal(ks[6], (channels_fuse, channels_fuse), jnp.float32),
        "b1": scale * jax.random.normal(ks[7], (1, channels_fuse), jnp.float32),
        "w2": scale * jax.random.normal(ks[8], (channels_fuse, channels_fuse), jnp.float32),
        "b2": scale * jax.random.normal(ks[9], (1, channels_fuse), jnp.float32),
    }
    if residual:
        p["wr"] = scale * jax.random.normal(
            ks[10], (channels_trans + channels_cnn, channels_fuse), jnp.float32)
        p["br"] = scale * jax.random.normal(ks[11], (1, channels_fuse), jnp.float32)
    return p


@functools.partial(jax.jit, static_argnames=("cf", "residual", "max_lane_tile"))
def _lafm_forward(x, y, wx, wy, bias, *, cf, residual, max_lane_tile=1024):
    N, Ct, H, W = x.shape
    _, Cc, _, _ = y.shape
    HW = H * W
    hwp = _round_up(HW, 128)          # pad only to the lane granule, not the tile
    k = 5 if residual else 4

    in_bytes = jnp.dtype(x.dtype).itemsize
    # conservative per-lane-column VMEM estimate: double-buffered x/y/out blocks
    # plus ~4 live f32 (k*Cf)-row intermediates.
    bytes_per_lane = 2 * (Ct + Cc) * in_bytes + 2 * cf * in_bytes + 4 * 4 * (k * cf)
    tl = _choose_lane_tile(hwp, N, bytes_per_lane, max_lane_tile, _VMEM_LIMIT // 2)

    xf = x.reshape(N, Ct, HW)
    yf = y.reshape(N, Cc, HW)
    if hwp != HW:
        xf = jnp.pad(xf, ((0, 0), (0, 0), (0, hwp - HW)))
        yf = jnp.pad(yf, ((0, 0), (0, 0), (0, hwp - HW)))

    grid = (N, hwp // tl)
    kernel = functools.partial(_lafm_kernel, cf=cf, residual=residual)

    out = pl.pallas_call(
        kernel,
        out_shape=jax.ShapeDtypeStruct((N, cf, hwp), x.dtype),
        grid_spec=pltpu.PrefetchScalarGridSpec(
            num_scalar_prefetch=0,
            grid=grid,
            in_specs=[
                pl.BlockSpec((1, Ct, tl), lambda n, m: (n, 0, m)),
                pl.BlockSpec((1, Cc, tl), lambda n, m: (n, 0, m)),
                pl.BlockSpec(wx.shape, lambda n, m: (0, 0)),
                pl.BlockSpec(wy.shape, lambda n, m: (0, 0)),
                pl.BlockSpec(bias.shape, lambda n, m: (0, 0)),
            ],
            out_specs=pl.BlockSpec((1, cf, tl), lambda n, m: (n, 0, m)),
        ),
        compiler_params=pltpu.CompilerParams(
            dimension_semantics=("parallel", "parallel"),
            vmem_limit_bytes=_VMEM_LIMIT,
        ),
    )(xf, yf, wx, wy, bias)

    if hwp != HW:
        out = out[:, :, :HW]
    return out.reshape(N, cf, H, W)


def lafm_forward(x, y, folded, max_lane_tile=1024):
    """x: transformer features NCHW, y: cnn features NCHW, folded: fold_lafm_params()."""
    assert x.dtype == folded["wx"].dtype == folded["wy"].dtype == y.dtype, (
        "activations and folded weights must share a dtype (cast once on the host)")
    return _lafm_forward(x, y, folded["wx"], folded["wy"], folded["bias"],
                         cf=folded["cf"], residual=folded["residual"],
                         max_lane_tile=max_lane_tile)


# ---------------------------------------------------------------------------
# Pure-JAX reference mirroring the PyTorch forward (NCHW, unfolded weights).
# ---------------------------------------------------------------------------

def lafm_reference(x, y, params, residual=False):
    def conv1x1(inp, w, b):  # inp NCHW, w (Cin, Cout), b (1, Cout)
        out = jnp.einsum("nchw,cf->nfhw", inp, w, precision="highest")
        return out + b.reshape(1, -1, 1, 1)

    if residual:
        res = conv1x1(jnp.concatenate([x, y], axis=1), params["wr"], params["br"])
    xt = conv1x1(x, params["wt"], params["bt"])
    yc = conv1x1(y, params["wc"], params["bc"])
    fuse = conv1x1(jnp.concatenate([xt, yc], axis=1), params["wf"], params["bf"])
    cf = xt.shape[1]
    a = jax.nn.sigmoid(conv1x1(fuse[:, :cf], params["w1"], params["b1"]))
    b = jax.nn.sigmoid(conv1x1(fuse[:, cf:], params["w2"], params["b2"]))
    w = jax.nn.softmax(jnp.stack([a, b], axis=0), axis=0)
    out = w[0] * xt + w[1] * yc
    if residual:
        out = out + res
    return out


if __name__ == "__main__":
    key = jax.random.PRNGKey(0)
    kx, ky, kp, kpr = jax.random.split(key, 4)

    N, H, W = 2, 16, 16
    channels_trans, channels_cnn, channels_fuse = 4, 6, 8

    x = jax.random.normal(kx, (N, channels_trans, H, W), jnp.float32)
    y = jax.random.normal(ky, (N, channels_cnn, H, W), jnp.float32)

    # --- residual=False, f32 path (numerics check) ---
    params = init_lafm_params(kp, channels_trans, channels_cnn, channels_fuse, residual=False)
    folded_f32 = fold_lafm_params(params, residual=False, compute_dtype=jnp.float32)
    out = lafm_forward(x, y, folded_f32)
    jax.block_until_ready(out)
    ref = lafm_reference(x, y, params, residual=False)
    np.testing.assert_allclose(np.asarray(out, np.float32), np.asarray(ref),
                               rtol=1e-2, atol=2e-3)
    assert out.shape == (N, channels_fuse, H, W)

    # --- residual=True, f32 path ---
    params_r = init_lafm_params(kpr, channels_trans, channels_cnn, channels_fuse, residual=True)
    folded_r = fold_lafm_params(params_r, residual=True, compute_dtype=jnp.float32)
    out_r = lafm_forward(x, y, folded_r)
    jax.block_until_ready(out_r)
    ref_r = lafm_reference(x, y, params_r, residual=True)
    np.testing.assert_allclose(np.asarray(out_r, np.float32), np.asarray(ref_r),
                               rtol=1e-2, atol=2e-3)
    assert out_r.shape == (N, channels_fuse, H, W)

    # --- residual=False, bf16 production path (half HBM traffic, f32 accum) ---
    folded_bf16 = fold_lafm_params(params, residual=False, compute_dtype=jnp.bfloat16)
    out_bf16 = lafm_forward(x.astype(jnp.bfloat16), y.astype(jnp.bfloat16), folded_bf16)
    jax.block_until_ready(out_bf16)
    np.testing.assert_allclose(np.asarray(out_bf16, np.float32), np.asarray(ref),
                               rtol=6e-2, atol=2e-2)
    assert out_bf16.shape == (N, channels_fuse, H, W)

    print("KERNEL_OK")
</pallas_src>

<mosaic_0001>
module attributes {stable_mosaic.version = 11 : i64} {
  func.func @_lafm_kernel(%arg0: i32, %arg1: i32, %arg2: memref<1x4x256xf32, #tpu.memory_space<vmem>>, %arg3: memref<1x6x256xf32, #tpu.memory_space<vmem>>, %arg4: memref<32x4xf32, #tpu.memory_space<vmem>>, %arg5: memref<32x6xf32, #tpu.memory_space<vmem>>, %arg6: memref<32x1xf32, #tpu.memory_space<vmem>>, %arg7: memref<1x8x256xf32, #tpu.memory_space<vmem>>) attributes {dimension_semantics = [#tpu.dimension_semantics<parallel>, #tpu.dimension_semantics<parallel>], iteration_bounds = array<i64: 2, 1>, scalar_prefetch = 0 : i64, scratch_operands = 0 : i64, tpu.core_type = #tpu.core_type<tc>, window_params = [{transform_indices = @transform_0, window_bounds = array<i64: 1, 4, 256>}, {transform_indices = @transform_1, window_bounds = array<i64: 1, 6, 256>}, {pipeline_mode = #tpu.pipeline_mode<synchronous>, transform_indices = @transform_2, window_bounds = array<i64: 32, 4>}, {pipeline_mode = #tpu.pipeline_mode<synchronous>, transform_indices = @transform_3, window_bounds = array<i64: 32, 6>}, {pipeline_mode = #tpu.pipeline_mode<synchronous>, transform_indices = @transform_4, window_bounds = array<i64: 32, 1>}, {transform_indices = @transform_5, window_bounds = array<i64: 1, 8, 256>}]} {
    %c0 = arith.constant 0 : index
    %c0_0 = arith.constant 0 : index
    %c0_1 = arith.constant 0 : index
    %0 = vector.load %arg2[%c0, %c0_0, %c0_1] : memref<1x4x256xf32, #tpu.memory_space<vmem>>, vector<1x4x256xf32>
    %1 = vector.shape_cast %0 : vector<1x4x256xf32> to vector<4x256xf32>
    %c0_2 = arith.constant 0 : index
    %c0_3 = arith.constant 0 : index
    %c0_4 = arith.constant 0 : index
    %2 = vector.load %arg3[%c0_2, %c0_3, %c0_4] : memref<1x6x256xf32, #tpu.memory_space<vmem>>, vector<1x6x256xf32>
    %3 = vector.shape_cast %2 : vector<1x6x256xf32> to vector<6x256xf32>
    %c0_5 = arith.constant 0 : index
    %c0_6 = arith.constant 0 : index
    %4 = vector.load %arg4[%c0_5, %c0_6] : memref<32x4xf32, #tpu.memory_space<vmem>>, vector<32x4xf32>
    %cst = arith.constant dense<0.000000e+00> : vector<32x256xf32>
    %5 = tpu.matmul %4, %1, %cst {dimension_numbers = #tpu.dot_dimension_numbers<[1], [0], [0], [1], [0, 0, 1, 1], [], []>} : vector<32x4xf32>, vector<4x256xf32>, vector<32x256xf32> -> vector<32x256xf32>
    %c0_7 = arith.constant 0 : index
    %c0_8 = arith.constant 0 : index
    %6 = vector.load %arg5[%c0_7, %c0_8] : memref<32x6xf32, #tpu.memory_space<vmem>>, vector<32x6xf32>
    %cst_9 = arith.constant dense<0.000000e+00> : vector<32x256xf32>
    %7 = tpu.matmul %6, %3, %cst_9 {dimension_numbers = #tpu.dot_dimension_numbers<[1], [0], [0], [1], [0, 0, 1, 1], [], []>} : vector<32x6xf32>, vector<6x256xf32>, vector<32x256xf32> -> vector<32x256xf32>
    %8 = arith.addf %5, %7 : vector<32x256xf32>
    %c0_10 = arith.constant 0 : index
    %c0_11 = arith.constant 0 : index
    %9 = vector.load %arg6[%c0_10, %c0_11] : memref<32x1xf32, #tpu.memory_space<vmem>>, vector<32x1xf32>
    %10 = vector.broadcast %9 : vector<32x1xf32> to vector<32x256xf32>
    %11 = arith.addf %8, %10 : vector<32x256xf32>
    %12 = vector.extract_strided_slice %11 {offsets = [0, 0], sizes = [8, 256], strides = [1, 1]} : vector<32x256xf32> to vector<8x256xf32>
    %13 = vector.extract_strided_slice %11 {offsets = [8, 0], sizes = [8, 256], strides = [1, 1]} : vector<32x256xf32> to vector<8x256xf32>
    %14 = vector.extract_strided_slice %11 {offsets = [16, 0], sizes = [8, 256], strides = [1, 1]} : vector<32x256xf32> to vector<8x256xf32>
    %15 = arith.negf %14 : vector<8x256xf32>
    %16 = math.exp %15 : vector<8x256xf32>
    %cst_12 = arith.constant 1.000000e+00 : f32
    %17 = vector.broadcast %cst_12 : f32 to vector<8x256xf32>
    %18 = arith.addf %17, %16 : vector<8x256xf32>
    %19 = arith.divf %17, %18 : vector<8x256xf32>
    %20 = vector.extract_strided_slice %11 {offsets = [24, 0], sizes = [8, 256], strides = [1, 1]} : vector<32x256xf32> to vector<8x256xf32>
    %21 = arith.negf %20 : vector<8x256xf32>
    %22 = math.exp %21 : vector<8x256xf32>
    %cst_13 = arith.constant 1.000000e+00 : f32
    %23 = vector.broadcast %cst_13 : f32 to vector<8x256xf32>
    %24 = arith.addf %23, %22 : vector<8x256xf32>
    %25 = arith.divf %23, %24 : vector<8x256xf32>
    %26 = arith.subf %19, %25 : vector<8x256xf32>
    %27 = arith.negf %26 : vector<8x256xf32>
    %28 = math.exp %27 : vector<8x256xf32>
    %cst_14 = arith.constant 1.000000e+00 : f32
    %29 = vector.broadcast %cst_14 : f32 to vector<8x256xf32>
    %30 = arith.addf %29, %28 : vector<8x256xf32>
    %31 = arith.divf %29, %30 : vector<8x256xf32>
    %32 = arith.mulf %31, %12 : vector<8x256xf32>
    %cst_15 = arith.constant 1.000000e+00 : f32
    %33 = vector.broadcast %cst_15 : f32 to vector<8x256xf32>
    %34 = arith.subf %33, %31 : vector<8x256xf32>
    %35 = arith.mulf %34, %13 : vector<8x256xf32>
    %36 = arith.addf %32, %35 : vector<8x256xf32>
    %c0_16 = arith.constant 0 : index
    %c0_17 = arith.constant 0 : index
    %c0_18 = arith.constant 0 : index
    %37 = vector.load %arg7[%c0_16, %c0_17, %c0_18] : memref<1x8x256xf32, #tpu.memory_space<vmem>>, vector<1x8x256xf32>
    %38 = vector.shape_cast %37 : vector<1x8x256xf32> to vector<8x256xf32>
    %39 = vector.shape_cast %36 : vector<8x256xf32> to vector<1x8x256xf32>
    tpu.vector_store %arg7[%c0_16, %c0_17, %c0_18], %39 {strides = array<i32>} : memref<1x8x256xf32, #tpu.memory_space<vmem>>, vector<1x8x256xf32>,
    return
  }
  func.func @transform_0(%arg0: i32, %arg1: i32) -> (i32, i32, i32) {
    %c0_i32 = arith.constant 0 : i32
    %c0_i32_0 = arith.constant 0 : i32
    return %arg0, %c0_i32, %arg1 : i32, i32, i32
  }
  func.func @transform_1(%arg0: i32, %arg1: i32) -> (i32, i32, i32) {
    %c0_i32 = arith.constant 0 : i32
    %c0_i32_0 = arith.constant 0 : i32
    return %arg0, %c0_i32, %arg1 : i32, i32, i32
  }
  func.func @transform_2(%arg0: i32, %arg1: i32) -> (i32, i32) {
    %c0_i32 = arith.constant 0 : i32
    %c0_i32_0 = arith.constant 0 : i32
    %c0_i32_1 = arith.constant 0 : i32
    return %c0_i32, %c0_i32_0 : i32, i32
  }
  func.func @transform_3(%arg0: i32, %arg1: i32) -> (i32, i32) {
    %c0_i32 = arith.constant 0 : i32
    %c0_i32_0 = arith.constant 0 : i32
    %c0_i32_1 = arith.constant 0 : i32
    return %c0_i32, %c0_i32_0 : i32, i32
  }
  func.func @transform_4(%arg0: i32, %arg1: i32) -> (i32, i32) {
    %c0_i32 = arith.constant 0 : i32
    %c0_i32_0 = arith.constant 0 : i32
    %c0_i32_1 = arith.constant 0 : i32
    return %c0_i32, %c0_i32_0 : i32, i32
  }
  func.func @transform_5(%arg0: i32, %arg1: i32) -> (i32, i32, i32) {
    %c0_i32 = arith.constant 0 : i32
    %c0_i32_0 = arith.constant 0 : i32
    return %arg0, %c0_i32, %arg1 : i32, i32, i32
  }
}

</mosaic_0001>

<llo_original>
// kernel: _lafm_forward.1
$region0: #{_lafm_forward.1}
  #allocation0 [shape = 'u32[]', space=smem, size = 0x4, offset = 0x4, fixed_abs, tag = 'smem constant byte address 0x4 - core index']
  #allocation1 [shape = 'u32[144,128]{1,0:T(1,128)}', space=vmem, size = 0x12000, scoped, tag = 'internal scratch']
  %s0 = inlined_call_operand.vmem [shape: f32[2,4,256], index: 0, kind: input, shape index: {}]
  %s1 = inlined_call_operand.vmem [shape: f32[2,6,256], index: 1, kind: input, shape index: {}]
  %s2 = inlined_call_operand.vmem [shape: f32[32,4], index: 2, kind: input, shape index: {}]
  %s3 = inlined_call_operand.vmem [shape: f32[32,6], index: 3, kind: input, shape index: {}]
  %s4 = inlined_call_operand.vmem [shape: f32[32,1], index: 4, kind: input, shape index: {}]
  %s5 = inlined_call_operand.vmem [shape: f32[2,8,256], index: 5, kind: output, shape index: {}]
  %s6 = sld [smem:[#allocation0]]
  $region53: #{_lafm_forward.1} parent=0
    _
  %s8 = ssub.s32 1, %s6
  %s9 = scalar_select 0, %s8, %s6
  loop: start=0, step=1, limit=4
  $region2: #{_lafm_forward.1} parent=0 // loop_pre_header
    _
  $region3: #{_lafm_forward.1} parent=0 // loop_header
    %s11 = sphi 0, %s15
    %p12 = scmp.ge.s32.totalorder %s11, 4
    %s18 = sphi 0, %s30
    %s19 = sphi 0, %s26
    %s20 = sphi 0, %s18
    %s21 = sphi 0, %s19
    %s22 = sphi 0, %s20
    %s23 = sphi 0, %s21
    %s35 = sphi 0, %s37
    %s38 = sphi 0, %s35
    %s39 = sphi 0, %s38
    %s55 = sphi 0, %s39
    %s63 = sphi 0, %s65
    %s66 = sphi 0, %s63
    %s67 = sphi 0, %s66
    %s83 = sphi 0, %s67
    %s87 = sphi 0, %s87
    %s89 = sphi 0, %s87
    %s90 = sphi 0, %s89
    %s104 = sphi 0, %s90
    %s108 = sphi 0, %s108
    %s110 = sphi 0, %s108
    %s111 = sphi 0, %s110
    %s125 = sphi 0, %s111
    %s129 = sphi 0, %s129
    %s131 = sphi 0, %s129
    %s132 = sphi 0, %s131
    %s146 = sphi 0, %s132
    %s154 = sphi 0, %s156
    %s157 = sphi 0, %s154
    %s158 = sphi 0, %s157
    %s174 = sphi 0, %s158
  $region4: #{_lafm_forward.1} parent=0 // loop_header_branch
    %14 = sbr.rel (%p12) target = $region8
  $region5: #{_lafm_forward.1} parent=0 // loop_body
    %s16 = ssub.s32 %s11, 1
    %s17 = ssub.s32 %s11, 2
    %s24 = sadd.s32 1, %s19
    %p25 = scmp.ge.s32.totalorder %s24, 1
    %s26 = scalar_select %p25, 0, %s24
    %s27 = sadd.s32 1, %s18
    %s28 = scalar_select %p25, %s27, %s18
    %p29 = scmp.ge.s32.totalorder %s28, 2
    %s30 = scalar_select %p29, 0, %s28
    %s31 = ssub.s32 %s18, %s30
    %s32 = ssub.s32 %s19, %s26
    %s33 = sor.u32 %s31, %s32
    %p34 = scmp.eq.s32.totalorder %s33, 0
    %s36 = sadd.s32 %s35, 1
    %s37 = scalar_select %p34, %s35, %s36
    %p40 = pneg %p34
    %p41 = scmp.eq.s32.totalorder %s11, 1
    %p42 = por %p40, %p41
    %p43 = scmp.ne.s32.totalorder %s35, %s38
    %p44 = scmp.eq.s32.totalorder %s11, 0
    %p45 = por %p43, %p44
    %p46 = scmp.ne.s32.totalorder %s35, %s38
    %p47 = scmp.eq.s32.totalorder %s16, 1
    %p48 = por %p46, %p47
    %p49 = scmp.ne.s32.totalorder %s38, %s39
    %p50 = scmp.eq.s32.totalorder %s16, 0
    %p51 = por %p49, %p50
    %p52 = scmp.ne.s32.totalorder %s38, %s39
    %p53 = scmp.eq.s32.totalorder %s17, 1
    %p54 = por %p52, %p53
    %p56 = scmp.ne.s32.totalorder %s39, %s55
    %p57 = scmp.eq.s32.totalorder %s17, 0
    %p58 = por %p56, %p57
    %s59 = ssub.s32 %s18, %s30
    %s60 = ssub.s32 %s19, %s26
    %s61 = sor.u32 %s59, %s60
    %p62 = scmp.eq.s32.totalorder %s61, 0
    %s64 = sadd.s32 %s63, 1
    %s65 = scalar_select %p62, %s63, %s64
    %p68 = pneg %p62
    %p69 = scmp.eq.s32.totalorder %s11, 1
    %p70 = por %p68, %p69
    %p71 = scmp.ne.s32.totalorder %s63, %s66
    %p72 = scmp.eq.s32.totalorder %s11, 0
    %p73 = por %p71, %p72
    %p74 = scmp.ne.s32.totalorder %s63, %s66
    %p75 = scmp.eq.s32.totalorder %s16, 1
    %p76 = por %p74, %p75
    %p77 = scmp.ne.s32.totalorder %s66, %s67
    %p78 = scmp.eq.s32.totalorder %s16, 0
    %p79 = por %p77, %p78
    %p80 = scmp.ne.s32.totalorder %s66, %s67
    %p81 = scmp.eq.s32.totalorder %s17, 1
    %p82 = por %p80, %p81
    %p84 = scmp.ne.s32.totalorder %s67, %s83
    %p85 = scmp.eq.s32.totalorder %s17, 0
    %p86 = por %p84, %p85
    %s88 = sadd.s32 %s87, 1
    %p91 = scmp.eq.s32.totalorder %s11, 1
    %p92 = scmp.ne.s32.totalorder %s87, %s89
    %p93 = scmp.eq.s32.totalorder %s11, 0
    %p94 = por %p92, %p93
    %p95 = scmp.ne.s32.totalorder %s87, %s89
    %p96 = scmp.eq.s32.totalorder %s16, 1
    %p97 = por %p95, %p96
    %p98 = scmp.ne.s32.totalorder %s89, %s90
    %p99 = scmp.eq.s32.totalorder %s16, 0
    %p100 = por %p98, %p99
    %p101 = scmp.ne.s32.totalorder %s89, %s90
    %p102 = scmp.eq.s32.totalorder %s17, 1
    %p103 = por %p101, %p102
    %p105 = scmp.ne.s32.totalorder %s90, %s104
    %p106 = scmp.eq.s32.totalorder %s17, 0
    %p107 = por %p105, %p106
    %s109 = sadd.s32 %s108, 1
    %p112 = scmp.eq.s32.totalorder %s11, 1
    %p113 = scmp.ne.s32.totalorder %s108, %s110
    %p114 = scmp.eq.s32.totalorder %s11, 0
    %p115 = por %p113, %p114
    %p116 = scmp.ne.s32.totalorder %s108, %s110
    %p117 = scmp.eq.s32.totalorder %s16, 1
    %p118 = por %p116, %p117
    %p119 = scmp.ne.s32.totalorder %s110, %s111
    %p120 = scmp.eq.s32.totalorder %s16, 0
    %p121 = por %p119, %p120
    %p122 = scmp.ne.s32.totalorder %s110, %s111
    %p123 = scmp.eq.s32.totalorder %s17, 1
    %p124 = por %p122, %p123
    %p126 = scmp.ne.s32.totalorder %s111, %s125
    %p127 = scmp.eq.s32.totalorder %s17, 0
    %p128 = por %p126, %p127
    %s130 = sadd.s32 %s129, 1
    %p133 = scmp.eq.s32.totalorder %s11, 1
    %p134 = scmp.ne.s32.totalorder %s129, %s131
    %p135 = scmp.eq.s32.totalorder %s11, 0
    %p136 = por %p134, %p135
    %p137 = scmp.ne.s32.totalorder %s129, %s131
    %p138 = scmp.eq.s32.totalorder %s16, 1
    %p139 = por %p137, %p138
    %p140 = scmp.ne.s32.totalorder %s131, %s132
    %p141 = scmp.eq.s32.totalorder %s16, 0
    %p142 = por %p140, %p141
    %p143 = scmp.ne.s32.totalorder %s131, %s132
    %p144 = scmp.eq.s32.totalorder %s17, 1
    %p145 = por %p143, %p144
    %p147 = scmp.ne.s32.totalorder %s132, %s146
    %p148 = scmp.eq.s32.totalorder %s17, 0
    %p149 = por %p147, %p148
    %s150 = ssub.s32 %s18, %s30
    %s151 = ssub.s32 %s19, %s26
    %s152 = sor.u32 %s150, %s151
    %p153 = scmp.eq.s32.totalorder %s152, 0
    %s155 = sadd.s32 %s154, 1
    %s156 = scalar_select %p153, %s154, %s155
    %p159 = pneg %p153
    %p160 = scmp.eq.s32.totalorder %s11, 1
    %p161 = por %p159, %p160
    %p162 = scmp.ne.s32.totalorder %s154, %s157
    %p163 = scmp.eq.s32.totalorder %s11, 0
    %p164 = por %p162, %p163
    %p165 = scmp.ne.s32.totalorder %s154, %s157
    %p166 = scmp.eq.s32.totalorder %s16, 1
    %p167 = por %p165, %p166
    %p168 = scmp.ne.s32.totalorder %s157, %s158
    %p169 = scmp.eq.s32.totalorder %s16, 0
    %p170 = por %p168, %p169
    %p171 = scmp.ne.s32.totalorder %s157, %s158
    %p172 = scmp.eq.s32.totalorder %s17, 1
    %p173 = por %p171, %p172
    %p175 = scmp.ne.s32.totalorder %s158, %s174
    %p176 = scmp.eq.s32.totalorder %s17, 0
    %p177 = por %p175, %p176
    %p178 = scmp.le.s32.totalorder 1, %s11
    %p179 = scmp.lt.s32.totalorder %s11, 3
    %p180 = pnand %p178, %p179
    %p181 = pneg %p180
    // Predicated region
    $region9: #{_lafm_forward.1} parent=5 // pred_check
      _
    $region10: #{_lafm_forward.1} parent=5 // pred_check_branch
      %183 = sbr.rel (%p180) target = $region12
    $region11: #{_lafm_forward.1} parent=5 // pred_region
      %s184 = ssub.s32 %s11, 1
      // Predicated region
      $region13: #{_lafm_forward.1} parent=11 // pred_check
        %p185 = pneg %p100
      $region14: #{_lafm_forward.1} parent=11 // pred_check_branch
        %187 = sbr.rel (%p185) target = $region16
      $region15: #{_lafm_forward.1} parent=11 // pred_region
        _
      $region16: #{_lafm_forward.1} parent=11 // pred_fallthru
        _
      // Predicated region
      $region17: #{_lafm_forward.1} parent=11 // pred_check
        %p188 = pneg %p121
      $region18: #{_lafm_forward.1} parent=11 // pred_check_branch
        %190 = sbr.rel (%p188) target = $region20
      $region19: #{_lafm_forward.1} parent=11 // pred_region
        _
      $region20: #{_lafm_forward.1} parent=11 // pred_fallthru
        _
      // Predicated region
      $region21: #{_lafm_forward.1} parent=11 // pred_check
        %p191 = pneg %p142
      $region22: #{_lafm_forward.1} parent=11 // pred_check_branch
        %193 = sbr.rel (%p191) target = $region24
      $region23: #{_lafm_forward.1} parent=11 // pred_region
        _
      $region24: #{_lafm_forward.1} parent=11 // pred_fallthru
        _
    $region12: #{_lafm_forward.1} parent=5 // pred_fallthru
      _
    %p194 = scmp.lt.s32.totalorder %s11, 2
    // Predicated region
    $region25: #{_lafm_forward.1} parent=5 // pred_check
      %p195 = pneg %p194
    $region26: #{_lafm_forward.1} parent=5 // pred_check_branch
      %197 = sbr.rel (%p195) target = $region28
    $region27: #{_lafm_forward.1} parent=5 // pred_region
      // Predicated region
      $region29: #{_lafm_forward.1} parent=27 // pred_check
        %p198 = pneg %p45
      $region30: #{_lafm_forward.1} parent=27 // pred_check_branch
        %200 = sbr.rel (%p198) target = $region32
      $region31: #{_lafm_forward.1} parent=27 // pred_region
        %s201 = smul.u32 2, %s19
        %p202 = scmp.lt.s32.totalorder %s18, 1
        %s203 = scalar_select %p202, %s18, 1
        %p204 = scmp.lt.s32.totalorder %s201, 1
        %s205 = scalar_select %p204, %s201, 1
        %s206 = smul.addr %s203, 2
        %s207 = sadd.s32 %s205, %s206
        %s208 = smul.addr %s207, 4
        %s209 = scalar_lea.vmem %s0, %s208
        %s210 = smul.u32 2, %s19
      $region32: #{_lafm_forward.1} parent=27 // pred_fallthru
        _
      // Predicated region
      $region33: #{_lafm_forward.1} parent=27 // pred_check
        %p211 = pneg %p73
      $region34: #{_lafm_forward.1} parent=27 // pred_check_branch
        %213 = sbr.rel (%p211) target = $region36
      $region35: #{_lafm_forward.1} parent=27 // pred_region
        %s214 = smul.u32 2, %s19
        %p215 = scmp.lt.s32.totalorder %s18, 1
        %s216 = scalar_select %p215, %s18, 1
        %p217 = scmp.lt.s32.totalorder %s214, 1
        %s218 = scalar_select %p217, %s214, 1
        %s219 = smul.addr %s216, 2
        %s220 = sadd.s32 %s218, %s219
        %s221 = smul.addr %s220, 8
        %s222 = scalar_lea.vmem %s1, %s221
        %s223 = smul.u32 2, %s19
      $region36: #{_lafm_forward.1} parent=27 // pred_fallthru
        _
    $region28: #{_lafm_forward.1} parent=5 // pred_fallthru
      _
    %p224 = scmp.le.s32.totalorder 1, %s11
    %p225 = scmp.lt.s32.totalorder %s11, 3
    %p226 = pnand %p224, %p225
    %p227 = pneg %p226
    // Predicated region
    $region37: #{_lafm_forward.1} parent=5 // pred_check
      _
    $region38: #{_lafm_forward.1} parent=5 // pred_check_branch
      %229 = sbr.rel (%p226) target = $region40
    $region39: #{_lafm_forward.1} parent=5 // pred_region
      %s230 = ssub.s32 %s11, 1
      %s231 = smul.u32 2, %s21
      %p232 = scmp.lt.s32.totalorder %s20, 1
      %s233 = scalar_select %p232, %s20, 1
      %p234 = scmp.lt.s32.totalorder %s231, 1
      %s235 = scalar_select %p234, %s231, 1
      %s236 = smul.addr %s233, 2
      %s237 = sadd.s32 %s235, %s236
      %s238 = smul.addr %s237, 4
      %s239 = scalar_lea.vmem %s0, %s238
      %p240 = pneg %p51
      %p241 = pneg %p48
      %s242 = smul.u32 2, %s21
      %p243 = scmp.lt.s32.totalorder %s20, 1
      %s244 = scalar_select %p243, %s20, 1
      %p245 = scmp.lt.s32.totalorder %s242, 1
      %s246 = scalar_select %p245, %s242, 1
      %s247 = smul.addr %s244, 2
      %s248 = sadd.s32 %s246, %s247
      %s249 = smul.addr %s248, 8
      %s250 = scalar_lea.vmem %s1, %s249
      %p251 = pneg %p79
      %p252 = pneg %p76
      %p253 = pneg %p100
      %p254 = pneg %p97
      %p255 = pneg %p121
      %p256 = pneg %p118
      %p257 = pneg %p142
      %p258 = pneg %p139
      %p259 = pneg %p170
      %p260 = pneg %p167
      %s261 = smul.u32 2, %s21
      %p262 = scmp.lt.s32.totalorder %s20, 1
      %s263 = scalar_select %p262, %s20, 1
      %p264 = scmp.lt.s32.totalorder %s261, 1
      %s265 = scalar_select %p264, %s261, 1
      %s266 = smul.addr %s263, 2
      %s267 = sadd.s32 %s265, %s266
      %s268 = smul.addr %s267, 8
      %s269 = scalar_lea.vmem %s5, %s268
      %s270 = smul.u32 2, %s21
      %p271 = scmp.lt.s32.totalorder %s20, 1
      %s272 = scalar_select %p271, %s20, 1
      %p273 = scmp.lt.s32.totalorder %s270, 1
      %s274 = scalar_select %p273, %s270, 1
      %s275 = smul.addr %s272, 2
      %s276 = sadd.s32 %s274, %s275
      %s277 = smul.addr %s276, 4
      %s278 = scalar_lea.vmem %s0, %s277
      %s279 = smul.u32 2, %s21
      %s280 = smul.u32 2, %s21
      %p281 = scmp.lt.s32.totalorder %s20, 1
      %s282 = scalar_select %p281, %s20, 1
      %p283 = scmp.lt.s32.totalorder %s280, 1
      %s284 = scalar_select %p283, %s280, 1
      %s285 = smul.addr %s282, 2
      %s286 = sadd.s32 %s284, %s285
      %s287 = smul.addr %s286, 8
      %s288 = scalar_lea.vmem %s1, %s287
      %s289 = smul.u32 2, %s21
      %s290 = smul.u32 2, %s21
      %p291 = scmp.lt.s32.totalorder %s20, 1
      %s292 = scalar_select %p291, %s20, 1
      %p293 = scmp.lt.s32.totalorder %s290, 1
      %s294 = scalar_select %p293, %s290, 1
      %s295 = smul.addr %s292, 2
      %s296 = sadd.s32 %s294, %s295
      %s297 = smul.addr %s296, 8
      %s298 = scalar_lea.vmem %s5, %s297
      %s299 = smul.u32 2, %s21
      %v300 = vld [vmem:[%s278] sm:$0xff]
      %v301 = vld [vmem:[%s288] sm:$0x3f]
      %v302 = vld [vmem:[%s288 + $0x8] sm:$0x3f]
      %v303 = vld [vmem:[%s2] sm:$0xff]
      %v304 = vld [vmem:[%s2 + $0x8] sm:$0xff]
      %v305 = vld [vmem:[%s2 + $0x10] sm:$0xff]
      %v306 = vld [vmem:[%s2 + $0x18] sm:$0xff]
      %v307 = vld [vmem:[%s3] sm:$0xff]
      %v308 = vld [vmem:[%s3 + $0x8] sm:$0xff]
      %v309 = vld [vmem:[%s3 + $0x10] sm:$0xff]
      %v310 = vld [vmem:[%s3 + $0x18] sm:$0xff]
      %vm311 = vcmask 48128
      %v313 = vsel %vm311, %v307, 0
      %v316 = vsel %vm311, %v308, 0
      %v319 = vsel %vm311, %v309, 0
      %v322 = vsel %vm311, %v310, 0
      %vm324 = vcmask 1045504
      %v326 = vsel %vm324, %v301, 0
      %v329 = vsel %vm324, %v302, 0
      %331 = vmatprep.subr.mxu0 %v329
      %332 = vmatpush1.msra.mxu0 %v326
      %333 = vmatprep.subr.mxu0 0.0
      %334 = vmatpush1.msra.mxu0 0.0
      %335 = vmatprep.subr.mxu0 0.0
      %336 = vmatpush1.msra.mxu0 0.0
      %337 = vmatprep.subr.mxu0 0.0
      %338 = vmatpush1.msra.mxu0 0.0
      %339 = vmatprep.subr.mxu0 0.0
      %340 = vmatpush1.msra.mxu0 0.0
      %341 = vmatprep.subr.mxu0 0.0
      %342 = vmatpush1.msra.mxu0 0.0
      %343 = vmatprep.subr.mxu0 0.0
      %344 = vmatpush1.msra.mxu0 0.0
      %345 = vmatprep.subr.mxu0 0.0
      %346 = vmatpush1.msra.mxu0 0.0
      %347 = vmatprep.subr.mxu0 0.0
      %348 = vmatpush1.msra.mxu0 0.0
      %349 = vmatprep.subr.mxu0 0.0
      %350 = vmatpush1.msra.mxu0 0.0
      %351 = vmatprep.subr.mxu0 0.0
      %352 = vmatpush1.msra.mxu0 0.0
      %353 = vmatprep.subr.mxu0 0.0
      %354 = vmatpush1.msra.mxu0 0.0
      %355 = vmatprep.subr.mxu0 0.0
      %356 = vmatpush1.msra.mxu0 0.0
      %357 = vmatprep.subr.mxu0 0.0
      %358 = vmatpush1.msra.mxu0 0.0
      %359 = vmatprep.subr.mxu0 0.0
      %360 = vmatpush1.msra.mxu0 0.0
      %361 = vmatprep.subr.mxu0 0.0
      %362 = vmatpush1.msra.mxu0 0.0
      %363 = vmatprep.subr.mxu0 0.0
      %364 = vmatpush1.msra.mxu0 0.0
      %365 = vmatprep.subr.mxu0 0.0
      %366 = vmatpush1.msra.mxu0 0.0
      %367 = vmatprep.subr.mxu0 0.0
      %368 = vmatpush1.msra.mxu0 0.0
      %369 = vmatprep.subr.mxu0 0.0
      %370 = vmatpush1.msra.mxu0 0.0
      %371 = vmatprep.subr.mxu0 0.0
      %372 = vmatpush1.msra.mxu0 0.0
      %373 = vmatprep.subr.mxu0 0.0
      %374 = vmatpush1.msra.mxu0 0.0
      %375 = vmatprep.subr.mxu0 0.0
      %376 = vmatpush1.msra.mxu0 0.0
      %377 = vmatprep.subr.mxu0 0.0
      %378 = vmatpush1.msra.mxu0 0.0
      %379 = vmatprep.subr.mxu0 0.0
      %380 = vmatpush1.msra.mxu0 0.0
      %381 = vmatprep.subr.mxu0 0.0
      %382 = vmatpush1.msra.mxu0 0.0
      %383 = vmatprep.subr.mxu0 0.0
      %384 = vmatpush1.msra.mxu0 0.0
      %385 = vmatprep.subr.mxu0 0.0
      %386 = vmatpush1.msra.mxu0 0.0
      %387 = vmatprep.subr.mxu0 0.0
      %388 = vmatpush1.msra.mxu0 0.0
      %389 = vmatprep.subr.mxu0 0.0
      %390 = vmatpush1.msra.mxu0 0.0
      %391 = vmatprep.subr.mxu0 0.0
      %392 = vmatpush1.msra.mxu0 0.0
      %393 = vmatprep.subr.mxu0 0.0
      %394 = vmatpush1.msra.mxu0 0.0
      %395 = vmatprep.mubr.f32.mxu0 0.0
      %396 = vmatmul.mubr.f32.gmra.mrb[0].mxu0 %v313
      %v397 = vpop.f32.mrb[0].mxu0
      %v398 = vadd.f32 0.0, %v397
      %v399 = vpop.f32.mrb[0].mxu0
      %v400 = vadd.f32 0.0, %v399
      %401 = vmatprep.mubr.f32.mxu0 0.0
      %402 = vmatmul.mubr.f32.gmra.mrb[0].mxu0 %v316
      %v403 = vpop.f32.mrb[0].mxu0
      %v404 = vadd.f32 0.0, %v403
      %v405 = vpop.f32.mrb[0].mxu0
      %v406 = vadd.f32 0.0, %v405
      %407 = vmatprep.mubr.f32.mxu0 0.0
      %408 = vmatmul.mubr.f32.gmra.mrb[0].mxu0 %v319
      %v409 = vpop.f32.mrb[0].mxu0
      %v410 = vadd.f32 0.0, %v409
      %v411 = vpop.f32.mrb[0].mxu0
      %v412 = vadd.f32 0.0, %v411
      %413 = vmatprep.mubr.f32.mxu0 0.0
      %414 = vmatmul.mubr.f32.gmra.mrb[0].mxu0 %v322
      %v415 = vpop.f32.mrb[0].mxu0
      %v416 = vadd.f32 0.0, %v415
      %v417 = vpop.f32.mrb[0].mxu0
      %v418 = vadd.f32 0.0, %v417
      %419 = vdwg.mxu0
      %v421 = vcombine.high %v300, %v300
      %vm422 = vcmask 31744
      %v424 = vsel %vm422, %v303, 0
      %v427 = vsel %vm422, %v304, 0
      %v430 = vsel %vm422, %v305, 0
      %v433 = vsel %vm422, %v306, 0
      %vm435 = vcmask 1043456
      %v436 = vsel %vm435, %v300, 0
      %v438 = vsel %vm435, %v421, 0
      %440 = vmatprep.subr.mxu0 %v438
      %441 = vmatpush1.msra.mxu0 %v436
      %442 = vmatprep.subr.mxu0 0.0
      %443 = vmatpush1.msra.mxu0 0.0
      %444 = vmatprep.subr.mxu0 0.0
      %445 = vmatpush1.msra.mxu0 0.0
      %446 = vmatprep.subr.mxu0 0.0
      %447 = vmatpush1.msra.mxu0 0.0
      %448 = vmatprep.subr.mxu0 0.0
      %449 = vmatpush1.msra.mxu0 0.0
      %450 = vmatprep.subr.mxu0 0.0
      %451 = vmatpush1.msra.mxu0 0.0
      %452 = vmatprep.subr.mxu0 0.0
      %453 = vmatpush1.msra.mxu0 0.0
      %454 = vmatprep.subr.mxu0 0.0
      %455 = vmatpush1.msra.mxu0 0.0
      %456 = vmatprep.subr.mxu0 0.0
      %457 = vmatpush1.msra.mxu0 0.0
      %458 = vmatprep.subr.mxu0 0.0
      %459 = vmatpush1.msra.mxu0 0.0
      %460 = vmatprep.subr.mxu0 0.0
      %461 = vmatpush1.msra.mxu0 0.0
      %462 = vmatprep.subr.mxu0 0.0
      %463 = vmatpush1.msra.mxu0 0.0
      %464 = vmatprep.subr.mxu0 0.0
      %465 = vmatpush1.msra.mxu0 0.0
      %466 = vmatprep.subr.mxu0 0.0
      %467 = vmatpush1.msra.mxu0 0.0
      %468 = vmatprep.subr.mxu0 0.0
      %469 = vmatpush1.msra.mxu0 0.0
      %470 = vmatprep.subr.mxu0 0.0
      %471 = vmatpush1.msra.mxu0 0.0
      %472 = vmatprep.subr.mxu0 0.0
      %473 = vmatpush1.msra.mxu0 0.0
      %474 = vmatprep.subr.mxu0 0.0
      %475 = vmatpush1.msra.mxu0 0.0
      %476 = vmatprep.subr.mxu0 0.0
      %477 = vmatpush1.msra.mxu0 0.0
      %478 = vmatprep.subr.mxu0 0.0
      %479 = vmatpush1.msra.mxu0 0.0
      %480 = vmatprep.subr.mxu0 0.0
      %481 = vmatpush1.msra.mxu0 0.0
      %482 = vmatprep.subr.mxu0 0.0
      %483 = vmatpush1.msra.mxu0 0.0
      %484 = vmatprep.subr.mxu0 0.0
      %485 = vmatpush1.msra.mxu0 0.0
      %486 = vmatprep.subr.mxu0 0.0
      %487 = vmatpush1.msra.mxu0 0.0
      %488 = vmatprep.subr.mxu0 0.0
      %489 = vmatpush1.msra.mxu0 0.0
      %490 = vmatprep.subr.mxu0 0.0
      %491 = vmatpush1.msra.mxu0 0.0
      %492 = vmatprep.subr.mxu0 0.0
      %493 = vmatpush1.msra.mxu0 0.0
      %494 = vmatprep.subr.mxu0 0.0
      %495 = vmatpush1.msra.mxu0 0.0
      %496 = vmatprep.subr.mxu0 0.0
      %497 = vmatpush1.msra.mxu0 0.0
      %498 = vmatprep.subr.mxu0 0.0
      %499 = vmatpush1.msra.mxu0 0.0
      %500 = vmatprep.subr.mxu0 0.0
      %501 = vmatpush1.msra.mxu0 0.0
      %502 = vmatprep.subr.mxu0 0.0
      %503 = vmatpush1.msra.mxu0 0.0
      %504 = vmatprep.mubr.f32.mxu0 0.0
      %505 = vmatmul.mubr.f32.gmra.mrb[0].mxu0 %v424
      %v506 = vpop.f32.mrb[0].mxu0
      %v507 = vadd.f32 %v398, %v506
      %v508 = vpop.f32.mrb[0].mxu0
      %v509 = vadd.f32 %v400, %v508
      %510 = vmatprep.mubr.f32.mxu0 0.0
      %511 = vmatmul.mubr.f32.gmra.mrb[0].mxu0 %v427
      %v512 = vpop.f32.mrb[0].mxu0
      %v513 = vadd.f32 %v404, %v512
      %v514 = vpop.f32.mrb[0].mxu0
      %v515 = vadd.f32 %v406, %v514
      %516 = vmatprep.mubr.f32.mxu0 0.0
      %517 = vmatmul.mubr.f32.gmra.mrb[0].mxu0 %v430
      %v518 = vpop.f32.mrb[0].mxu0
      %v519 = vadd.f32 %v410, %v518
      %v520 = vpop.f32.mrb[0].mxu0
      %v521 = vadd.f32 %v412, %v520
      %522 = vmatprep.mubr.f32.mxu0 0.0
      %523 = vmatmul.mubr.f32.gmra.mrb[0].mxu0 %v433
      %v524 = vpop.f32.mrb[0].mxu0
      %v525 = vadd.f32 %v416, %v524
      %v526 = vpop.f32.mrb[0].mxu0
      %v527 = vadd.f32 %v418, %v526
      %528 = vdwg.mxu0
      %v529 = vld [vmem:[%s4] sm:$0xff]
      %v530 = vld [vmem:[%s4 + $0x8] sm:$0xff]
      %v531 = vld [vmem:[%s4 + $0x10] sm:$0xff]
      %v532 = vld [vmem:[%s4 + $0x18] sm:$0xff]
      %534 = vset.pattern.permute.xlu0 0
      %535 = vperm.xlu0 %534, %v529
      %v536 = vpop.permute.xlu0 %535
      %539 = vset.pattern.permute.xlu0 0
      %540 = vperm.xlu0 %539, %v530
      %v541 = vpop.permute.xlu0 %540
      %544 = vset.pattern.permute.xlu0 0
      %545 = vperm.xlu0 %544, %v531
      %v546 = vpop.permute.xlu0 %545
      %549 = vset.pattern.permute.xlu0 0
      %550 = vperm.xlu0 %549, %v532
      %v551 = vpop.permute.xlu0 %550
      %v553 = vadd.f32 %v507, %v536
      %v554 = vadd.f32 %v509, %v536
      %v555 = vadd.f32 %v513, %v541
      %v556 = vadd.f32 %v515, %v541
      %v557 = vadd.f32 %v519, %v546
      %v558 = vadd.f32 %v521, %v546
      %v559 = vadd.f32 %v525, %v551
      %v560 = vadd.f32 %v527, %v551
      %v561 = vxor.u32 %v557, 2147483648
      %v562 = vxor.u32 %v558, 2147483648
      %v563 = vmul.f32 %v561, 1.442695
      %v564 = vpow.pop %v563
      %v565 = vmul.f32 %v562, 1.442695
      %v566 = vpow.pop %v565
      %v567 = vadd.f32 %v564, 1.0
      %v568 = vadd.f32 %v566, 1.0
      %v569 = vrcp.pop %v567
      %v570 = vmul.f32 1.0, %v569
      %v571 = vrcp.pop %v568
      %v572 = vmul.f32 1.0, %v571
      %v573 = vxor.u32 %v559, 2147483648
      %v574 = vxor.u32 %v560, 2147483648
      %v575 = vmul.f32 %v573, 1.442695
      %v576 = vpow.pop %v575
      %v577 = vmul.f32 %v574, 1.442695
      %v578 = vpow.pop %v577
      %v579 = vadd.f32 %v576, 1.0
      %v580 = vadd.f32 %v578, 1.0
      %v581 = vrcp.pop %v579
      %v582 = vmul.f32 1.0, %v581
      %v583 = vrcp.pop %v580
      %v584 = vmul.f32 1.0, %v583
      %v585 = vsub.f32 %v570, %v582
      %v586 = vsub.f32 %v572, %v584
      %v587 = vxor.u32 %v585, 2147483648
      %v588 = vxor.u32 %v586, 2147483648
      %v589 = vmul.f32 %v587, 1.442695
      %v590 = vpow.pop %v589
      %v591 = vmul.f32 %v588, 1.442695
      %v592 = vpow.pop %v591
      %v593 = vadd.f32 %v590, 1.0
      %v594 = vadd.f32 %v592, 1.0
      %v595 = vrcp.pop %v593
      %v596 = vmul.f32 1.0, %v595
      %v597 = vrcp.pop %v594
      %v598 = vmul.f32 1.0, %v597
      %v599 = vmul.f32 %v596, %v553
      %v600 = vmul.f32 %v598, %v554
      %v601 = vsub.f32 1.0, %v596
      %v602 = vsub.f32 1.0, %v598
      %v603 = vmul.f32 %v601, %v555
      %v604 = vmul.f32 %v602, %v556
      %v605 = vadd.f32 %v599, %v603
      %v606 = vadd.f32 %v600, %v604
      %607 = vst [vmem:[%s298] sm:$0xff] %v605
      %608 = vst [vmem:[%s298 + $0x8] sm:$0xff] %v606
      %s609 = smul.u32 2, %s21
      %p610 = scmp.lt.s32.totalorder %s20, 1
      %s611 = scalar_select %p610, %s20, 1
      %p612 = scmp.lt.s32.totalorder %s609, 1
      %s613 = scalar_select %p612, %s609, 1
      %s614 = smul.addr %s611, 2
      %s615 = sadd.s32 %s613, %s614
      %s616 = smul.addr %s615, 8
      %s617 = scalar_lea.vmem %s5, %s616
      // Predicated region
      $region41: #{_lafm_forward.1} parent=39 // pred_check
        %p618 = pneg %p167
      $region42: #{_lafm_forward.1} parent=39 // pred_check_branch
        %620 = sbr.rel (%p618) target = $region44
      $region43: #{_lafm_forward.1} parent=39 // pred_region
        %s621 = smul.u32 2, %s21
      $region44: #{_lafm_forward.1} parent=39 // pred_fallthru
        _
    $region40: #{_lafm_forward.1} parent=5 // pred_fallthru
      _
    %p622 = scmp.le.s32.totalorder 2, %s11
    // Predicated region
    $region45: #{_lafm_forward.1} parent=5 // pred_check
      %p623 = pneg %p622
    $region46: #{_lafm_forward.1} parent=5 // pred_check_branch
      %625 = sbr.rel (%p623) target = $region48
    $region47: #{_lafm_forward.1} parent=5 // pred_region
      %s626 = ssub.s32 %s11, 2
      // Predicated region
      $region49: #{_lafm_forward.1} parent=47 // pred_check
        %p627 = pneg %p173
      $region50: #{_lafm_forward.1} parent=47 // pred_check_branch
        %629 = sbr.rel (%p627) target = $region52
      $region51: #{_lafm_forward.1} parent=47 // pred_region
        %s630 = smul.u32 2, %s23
        %p631 = scmp.lt.s32.totalorder %s22, 1
        %s632 = scalar_select %p631, %s22, 1
        %p633 = scmp.lt.s32.totalorder %s630, 1
        %s634 = scalar_select %p633, %s630, 1
        %s635 = smul.addr %s632, 2
        %s636 = sadd.s32 %s634, %s635
        %s637 = smul.addr %s636, 8
        %s638 = scalar_lea.vmem %s5, %s637
      $region52: #{_lafm_forward.1} parent=47 // pred_fallthru
        _
    $region48: #{_lafm_forward.1} parent=5 // pred_fallthru
      _
  $region6: #{_lafm_forward.1} parent=0 // loop_footer
    %s15 = sadd.s32 1, %s11
  $region7: #{_lafm_forward.1} parent=0 // loop_footer_branch
    %10 = sbr.rel target = $region3
  $region8: #{_lafm_forward.1} parent=0 // loop_exit
    _

</llo_original>
